<compile_context>
chip_gen: v7x
topology: tpu7x:2x2x1
jax: 0.10.0
libtpu: 0.0.40
codegen_flags: <defaults>
</compile_context>

<pallas_src>
import functools

import jax
import jax.numpy as jnp
from jax import lax
from jax.experimental import pallas as pl
from jax.experimental.pallas import tpu as pltpu


# -----------------------------------------------------------------------------
# Kernels
# -----------------------------------------------------------------------------
def _mlp_fused_kernel(x_ref, wt_ref, b_ref, o_ref):
    """All layers in one grid step.

    x_ref:  (B, D)     f32   input
    wt_ref: (L, D, D)  bf16  pre-transposed weights (in, out), resident in VMEM
    b_ref:  (L, D)     f32   biases, resident in VMEM
    o_ref:  (B, D)     f32   output
    """
    n_layers = wt_ref.shape[0]

    def hidden_layer(l, act):
        # act (bf16) @ W_t (bf16) -> f32 accumulate on the MXU, bias in f32.
        h = jnp.dot(act, wt_ref[l], preferred_element_type=jnp.float32)
        h = h + b_ref[pl.ds(l, 1), :]
        return jnp.maximum(h, 0.0).astype(jnp.bfloat16)

    # Layers 0 .. L-2 (Linear + ReLU), activation carried in vregs as bf16.
    act0 = x_ref[...].astype(jnp.bfloat16)          # in-kernel cast (free VPU)
    act = lax.fori_loop(0, n_layers - 1, hidden_layer, act0, unroll=True)

    # Final layer: Linear only, f32 output.
    h = jnp.dot(act, wt_ref[n_layers - 1], preferred_element_type=jnp.float32)
    o_ref[...] = (h + b_ref[pl.ds(n_layers - 1, 1), :]).astype(o_ref.dtype)


def _mlp_streamed_kernel(x_ref, wt_ref, b_ref, o_ref, act_ref):
    """One layer per grid step (weights streamed from HBM); for large D.

    x_ref:  (B, D)  f32   (same block every step, consumed only at layer 0)
    wt_ref: (D, D)  bf16  layer weight panel (layer dim squeezed out)
    b_ref:  (L, D)  f32   resident bias stack
    o_ref:  (B, D)  f32   (same block every step, written only at last layer)
    act_ref:(B, D)  bf16  resident activation scratch
    """
    layer = pl.program_id(0)
    n_layers = pl.num_programs(0)
    is_last = layer == n_layers - 1

    @pl.when(layer == 0)
    def _():
        act_ref[...] = x_ref[...].astype(act_ref.dtype)

    h = jnp.dot(act_ref[...], wt_ref[...], preferred_element_type=jnp.float32)
    h = h + b_ref[pl.ds(layer, 1), :]

    @pl.when(jnp.logical_not(is_last))
    def _():
        act_ref[...] = jnp.maximum(h, 0.0).astype(act_ref.dtype)

    @pl.when(is_last)
    def _():
        o_ref[...] = h.astype(o_ref.dtype)


# -----------------------------------------------------------------------------
# Wrapper
# -----------------------------------------------------------------------------
_FUSED_WEIGHT_BYTES_MAX = 16 * 1024 * 1024   # keep full weight stack resident


@functools.partial(jax.jit, static_argnames=("force_streamed",))
def mlp_forward(x, weights_t_bf16, biases, force_streamed=False):
    """x: (B, D) f32; weights_t_bf16: (L, D_in, D_out) bf16; biases: (L, D) f32."""
    B, D = x.shape
    L = weights_t_bf16.shape[0]

    weight_bytes = L * D * D * 2
    fused = (not force_streamed) and (weight_bytes <= _FUSED_WEIGHT_BYTES_MAX)

    # Advisory cost hint for XLA scheduling around this (short) custom call.
    cost = pl.CostEstimate(
        flops=2 * L * B * D * D,
        transcendentals=0,
        bytes_accessed=weight_bytes + L * D * 4 + 2 * B * D * 4,
    )

    # VMEM budget from actual buffer bytes (2x margin for double-buffering /
    # compiler scratch), capped well below v7x's 64 MiB per-TC VMEM.
    act_bytes = B * D * 2
    io_bytes = 2 * (2 * B * D * 4) + 2 * L * D * 4
    resident_w = weight_bytes if fused else 2 * D * D * 2
    vmem_limit = int(min(48 * 1024 * 1024,
                         max(2 * (resident_w + act_bytes + io_bytes),
                             4 * 1024 * 1024)))

    compiler_params = pltpu.CompilerParams(
        dimension_semantics=("arbitrary",),      # sequential over layers/steps
        vmem_limit_bytes=vmem_limit,
    )

    if fused:
        return pl.pallas_call(
            _mlp_fused_kernel,
            out_shape=jax.ShapeDtypeStruct((B, D), jnp.float32),
            grid_spec=pltpu.PrefetchScalarGridSpec(
                num_scalar_prefetch=0,
                grid=(1,),
                in_specs=[
                    pl.BlockSpec((B, D), lambda i: (0, 0)),          # x (f32)
                    pl.BlockSpec((L, D, D), lambda i: (0, 0, 0)),    # weights
                    pl.BlockSpec((L, D), lambda i: (0, 0)),          # biases
                ],
                out_specs=pl.BlockSpec((B, D), lambda i: (0, 0)),
            ),
            compiler_params=compiler_params,
            cost_estimate=cost,
        )(x, weights_t_bf16, biases)

    # Streamed path (large D): weights DMA'd layer by layer.
    return pl.pallas_call(
        _mlp_streamed_kernel,
        out_shape=jax.ShapeDtypeStruct((B, D), jnp.float32),
        grid_spec=pltpu.PrefetchScalarGridSpec(
            num_scalar_prefetch=0,
            grid=(L,),
            in_specs=[
                # input: same block every step, only read at layer 0
                pl.BlockSpec((B, D), lambda l: (0, 0)),
                # layer-l weight panel (D_in, D_out); layer dim squeezed out
                pl.BlockSpec((pl.Squeezed(), D, D), lambda l: (l, 0, 0)),
                # resident bias stack, fetched once
                pl.BlockSpec((L, D), lambda l: (0, 0)),
            ],
            out_specs=pl.BlockSpec((B, D), lambda l: (0, 0)),
            scratch_shapes=[pltpu.VMEM((B, D), jnp.bfloat16)],
        ),
        compiler_params=compiler_params,
        cost_estimate=cost,
    )(x, weights_t_bf16, biases)


# -----------------------------------------------------------------------------
# Params / references
# -----------------------------------------------------------------------------
def init_mlp_params(key, dim, hlayers):
    """Deterministic init mirroring nn.Linear(dim, dim) x hlayers:
    weight (out, in) and bias (out,), uniform(-1/sqrt(dim), 1/sqrt(dim))."""
    keys = jax.random.split(key, 2 * hlayers)
    ws, bs = [], []
    bound = 1.0 / jnp.sqrt(jnp.float32(dim))
    for i in range(hlayers):
        w = jax.random.uniform(keys[2 * i], (dim, dim), jnp.float32,
                               minval=-bound, maxval=bound)     # (out, in)
        b = jax.random.uniform(keys[2 * i + 1], (dim,), jnp.float32,
                               minval=-bound, maxval=bound)
        ws.append(w)
        bs.append(b)
    weights = jnp.stack(ws)                                     # (L, out, in)
    biases = jnp.stack(bs)                                      # (L, out)
    weights_t_bf16 = jnp.transpose(weights, (0, 2, 1)).astype(jnp.bfloat16)
    return weights, biases, weights_t_bf16


def reference_mlp_f32(x, weights, biases):
    """Pure f32 reference (exact PyTorch-module semantics)."""
    L = weights.shape[0]
    h = x
    for i in range(L):
        h = h @ weights[i].T + biases[i]
        if i != L - 1:
            h = jnp.maximum(h, 0.0)
    return h


def reference_mlp_bf16(x, weights_t_bf16, biases):
    """Reference emulating the kernel's bf16-input / f32-accumulate numerics."""
    L = weights_t_bf16.shape[0]
    h = x.astype(jnp.bfloat16).astype(jnp.float32)
    for i in range(L):
        h = h @ weights_t_bf16[i].astype(jnp.float32) + biases[i]
        if i != L - 1:
            h = jnp.maximum(h, 0.0).astype(jnp.bfloat16).astype(jnp.float32)
    return h


# -----------------------------------------------------------------------------
# Test
# -----------------------------------------------------------------------------
if __name__ == "__main__":
    dim = 128       # lane-aligned (multiple of 128)
    hlayers = 3
    batch = 8       # sublane-aligned

    key = jax.random.PRNGKey(0)
    kx, kp = jax.random.split(key)
    x = jax.random.normal(kx, (batch, dim), jnp.float32)
    weights, biases, weights_t_bf16 = init_mlp_params(kp, dim, hlayers)

    ref_bf16 = reference_mlp_bf16(x, weights_t_bf16, biases)
    ref_f32 = reference_mlp_f32(x, weights, biases)

    # Fused (single grid step) path — the default at this shape.
    out_fused = jax.block_until_ready(mlp_forward(x, weights_t_bf16, biases))
    assert out_fused.shape == (batch, dim)
    assert jnp.allclose(out_fused, ref_bf16, atol=1e-4, rtol=1e-4), \
        "fused path: mismatch vs bf16-emulating reference"
    assert jnp.allclose(out_fused, ref_f32, atol=5e-2, rtol=5e-2), \
        "fused path: mismatch vs f32 reference"

    # Streamed (per-layer grid) path — kept for large D; verify it too.
    out_str = jax.block_until_ready(
        mlp_forward(x, weights_t_bf16, biases, force_streamed=True))
    assert out_str.shape == (batch, dim)
    assert jnp.allclose(out_str, ref_bf16, atol=1e-4, rtol=1e-4), \
        "streamed path: mismatch vs bf16-emulating reference"
    assert jnp.allclose(out_str, ref_f32, atol=5e-2, rtol=5e-2), \
        "streamed path: mismatch vs f32 reference"

    print("KERNEL_OK")
</pallas_src>

<mosaic_0001>
module attributes {stable_mosaic.version = 11 : i64} {
  func.func @_mlp_fused_kernel(%arg0: i32, %arg1: memref<8x128xf32, #tpu.memory_space<vmem>>, %arg2: memref<3x128x128xbf16, #tpu.memory_space<vmem>>, %arg3: memref<3x128xf32, #tpu.memory_space<vmem>>, %arg4: memref<8x128xf32, #tpu.memory_space<vmem>>) attributes {dimension_semantics = [#tpu.dimension_semantics<arbitrary>], iteration_bounds = array<i64: 1>, scalar_prefetch = 0 : i64, scratch_operands = 0 : i64, tpu.core_type = #tpu.core_type<tc>, window_params = [{pipeline_mode = #tpu.pipeline_mode<synchronous>, transform_indices = @transform_0, window_bounds = array<i64: 8, 128>}, {pipeline_mode = #tpu.pipeline_mode<synchronous>, transform_indices = @transform_1, window_bounds = array<i64: 3, 128, 128>}, {pipeline_mode = #tpu.pipeline_mode<synchronous>, transform_indices = @transform_2, window_bounds = array<i64: 3, 128>}, {pipeline_mode = #tpu.pipeline_mode<synchronous>, transform_indices = @transform_3, window_bounds = array<i64: 8, 128>}]} {
    %c0 = arith.constant 0 : index
    %c0_0 = arith.constant 0 : index
    %0 = vector.load %arg1[%c0, %c0_0] : memref<8x128xf32, #tpu.memory_space<vmem>>, vector<8x128xf32>
    %1 = arith.truncf %0 : vector<8x128xf32> to vector<8x128xbf16>
    %c0_i32 = arith.constant 0 : i32
    %2 = arith.index_cast %c0_i32 : i32 to index
    %c0_1 = arith.constant 0 : index
    %c0_2 = arith.constant 0 : index
    %3 = vector.load %arg2[%2, %c0_1, %c0_2] : memref<3x128x128xbf16, #tpu.memory_space<vmem>>, vector<1x128x128xbf16>
    %4 = vector.shape_cast %3 : vector<1x128x128xbf16> to vector<128x128xbf16>
    %cst = arith.constant dense<0.000000e+00> : vector<8x128xf32>
    %5 = tpu.matmul %1, %4, %cst {dimension_numbers = #tpu.dot_dimension_numbers<[1], [0], [0], [1], [0, 0, 1, 1], [], []>} : vector<8x128xbf16>, vector<128x128xbf16>, vector<8x128xf32> -> vector<8x128xf32>
    %6 = arith.index_cast %c0_i32 : i32 to index
    %c0_3 = arith.constant 0 : index
    %7 = vector.load %arg3[%6, %c0_3] : memref<3x128xf32, #tpu.memory_space<vmem>>, vector<1x128xf32>
    %8 = vector.broadcast %7 : vector<1x128xf32> to vector<8x128xf32>
    %9 = arith.addf %5, %8 : vector<8x128xf32>
    %cst_4 = arith.constant 0.000000e+00 : f32
    %10 = vector.broadcast %cst_4 : f32 to vector<8x128xf32>
    %11 = arith.maximumf %9, %10 : vector<8x128xf32>
    %12 = arith.truncf %11 : vector<8x128xf32> to vector<8x128xbf16>
    %c1_i32 = arith.constant 1 : i32
    %13 = arith.index_cast %c1_i32 : i32 to index
    %c0_5 = arith.constant 0 : index
    %c0_6 = arith.constant 0 : index
    %14 = vector.load %arg2[%13, %c0_5, %c0_6] : memref<3x128x128xbf16, #tpu.memory_space<vmem>>, vector<1x128x128xbf16>
    %15 = vector.shape_cast %14 : vector<1x128x128xbf16> to vector<128x128xbf16>
    %cst_7 = arith.constant dense<0.000000e+00> : vector<8x128xf32>
    %16 = tpu.matmul %12, %15, %cst_7 {dimension_numbers = #tpu.dot_dimension_numbers<[1], [0], [0], [1], [0, 0, 1, 1], [], []>} : vector<8x128xbf16>, vector<128x128xbf16>, vector<8x128xf32> -> vector<8x128xf32>
    %17 = arith.index_cast %c1_i32 : i32 to index
    %c0_8 = arith.constant 0 : index
    %18 = vector.load %arg3[%17, %c0_8] : memref<3x128xf32, #tpu.memory_space<vmem>>, vector<1x128xf32>
    %19 = vector.broadcast %18 : vector<1x128xf32> to vector<8x128xf32>
    %20 = arith.addf %16, %19 : vector<8x128xf32>
    %cst_9 = arith.constant 0.000000e+00 : f32
    %21 = vector.broadcast %cst_9 : f32 to vector<8x128xf32>
    %22 = arith.maximumf %20, %21 : vector<8x128xf32>
    %23 = arith.truncf %22 : vector<8x128xf32> to vector<8x128xbf16>
    %c2_i32 = arith.constant 2 : i32
    %c2 = arith.constant 2 : index
    %c0_10 = arith.constant 0 : index
    %c0_11 = arith.constant 0 : index
    %24 = vector.load %arg2[%c2, %c0_10, %c0_11] : memref<3x128x128xbf16, #tpu.memory_space<vmem>>, vector<1x128x128xbf16>
    %25 = vector.shape_cast %24 : vector<1x128x128xbf16> to vector<128x128xbf16>
    %cst_12 = arith.constant dense<0.000000e+00> : vector<8x128xf32>
    %26 = tpu.matmul %23, %25, %cst_12 {dimension_numbers = #tpu.dot_dimension_numbers<[1], [0], [0], [1], [0, 0, 1, 1], [], []>} : vector<8x128xbf16>, vector<128x128xbf16>, vector<8x128xf32> -> vector<8x128xf32>
    %c2_13 = arith.constant 2 : index
    %c0_14 = arith.constant 0 : index
    %27 = vector.load %arg3[%c2_13, %c0_14] : memref<3x128xf32, #tpu.memory_space<vmem>>, vector<1x128xf32>
    %28 = vector.broadcast %27 : vector<1x128xf32> to vector<8x128xf32>
    %29 = arith.addf %26, %28 : vector<8x128xf32>
    %c0_15 = arith.constant 0 : index
    %c0_16 = arith.constant 0 : index
    %30 = vector.load %arg4[%c0_15, %c0_16] : memref<8x128xf32, #tpu.memory_space<vmem>>, vector<8x128xf32>
    tpu.vector_store %arg4[%c0_15, %c0_16], %29 {strides = array<i32>} : memref<8x128xf32, #tpu.memory_space<vmem>>, vector<8x128xf32>,
    return
  }
  func.func @transform_0(%arg0: i32) -> (i32, i32) {
    %c0_i32 = arith.constant 0 : i32
    %c0_i32_0 = arith.constant 0 : i32
    %c0_i32_1 = arith.constant 0 : i32
    return %c0_i32, %c0_i32_0 : i32, i32
  }
  func.func @transform_1(%arg0: i32) -> (i32, i32, i32) {
    %c0_i32 = arith.constant 0 : i32
    %c0_i32_0 = arith.constant 0 : i32
    %c0_i32_1 = arith.constant 0 : i32
    %c0_i32_2 = arith.constant 0 : i32
    return %c0_i32, %c0_i32_0, %c0_i32_1 : i32, i32, i32
  }
  func.func @transform_2(%arg0: i32) -> (i32, i32) {
    %c0_i32 = arith.constant 0 : i32
    %c0_i32_0 = arith.constant 0 : i32
    %c0_i32_1 = arith.constant 0 : i32
    return %c0_i32, %c0_i32_0 : i32, i32
  }
  func.func @transform_3(%arg0: i32) -> (i32, i32) {
    %c0_i32 = arith.constant 0 : i32
    %c0_i32_0 = arith.constant 0 : i32
    %c0_i32_1 = arith.constant 0 : i32
    return %c0_i32, %c0_i32_0 : i32, i32
  }
}

</mosaic_0001>

<llo_original>
// kernel: mlp_forward.1
$region0: #{mlp_forward.1}
  #allocation0 [shape = 'u32[]', space=smem, size = 0x4, offset = 0x4, fixed_abs, tag = 'smem constant byte address 0x4 - core index']
  #allocation1 [shape = 'u32[144,128]{1,0:T(1,128)}', space=vmem, size = 0x12000, scoped, tag = 'internal scratch']
  %s0 = inlined_call_operand.hbm [shape: f32[8,128], index: 0, kind: input, shape index: {}]
  %s1 = inlined_call_operand.hbm [shape: bf16[3,128,128], index: 1, kind: input, shape index: {}]
  %s2 = inlined_call_operand.vmem [shape: f32[3,128], index: 2, kind: input, shape index: {}]
  %s3 = inlined_call_operand.hbm [shape: f32[8,128], index: 3, kind: output, shape index: {}]
  %s4 = sld [smem:[#allocation0]]
  $region30: #{mlp_forward.1} parent=0
    _
  %s6 = ssub.s32 1, %s4
  %s7 = scalar_select 0, %s6, %s4
  $region1: #{mlp_forward.1} parent=0
    #allocation2 [shape = 'u8[4096]{0}', space=vmem, size = 0x1000, scoped, tag = 'input window, operand 0, single buffered']
    #allocation3 [shape = 's32[1]{0}', space=sflag, size = 0x4, scoped, tag = 'scoped memory for mlp_forward.1']
    #allocation4 [shape = 's32[1]{0}', space=sflag, size = 0x4, scoped, tag = 'scoped memory for mlp_forward.1']
    #allocation5 [shape = 'u8[98304]{0}', space=vmem, size = 0x18000, scoped, tag = 'input window, operand 1, single buffered']
    #allocation6 [shape = 's32[1]{0}', space=sflag, size = 0x4, scoped, tag = 'scoped memory for mlp_forward.1']
    #allocation7 [shape = 'u8[4096]{0}', space=vmem, size = 0x1000, scoped, tag = 'output window, operand 0, single buffered']
    %8 = vsyncpa [#allocation3], 0
    %9 = vsyncpa [#allocation6], 0
    %10 = vsyncpa [#allocation4], 0
    // Predicated region
    $region2: #{mlp_forward.1} parent=1 // pred_check
      _
    $region3: #{mlp_forward.1} parent=1 // pred_check_branch
      %12 = sbr.rel (0) target = $region5
    $region4: #{mlp_forward.1} parent=1 // pred_region
      %s14 = ssub.s32 128, 128
      %15 = vsyncadd [#allocation3], %s14
      %s17 = sshll.u32 [#allocation2], 4
      %s18 = int_to_ptr.vmem [resolvable:$true] %s17
      %20 = dma.hbm_to_vmem [thread:$0]  %s0, 128, %s18, [#allocation3]
    $region5: #{mlp_forward.1} parent=1 // pred_fallthru
      _
    // Predicated region
    $region6: #{mlp_forward.1} parent=1 // pred_check
      _
    $region7: #{mlp_forward.1} parent=1 // pred_check_branch
      %22 = sbr.rel (0) target = $region9
    $region8: #{mlp_forward.1} parent=1 // pred_region
      %s24 = ssub.s32 3072, 3072
      %25 = vsyncadd [#allocation6], %s24
      %s26 = sshll.u32 [#allocation5], 4
      %s27 = int_to_ptr.vmem [resolvable:$true] %s26
      %32 = dma.hbm_to_vmem [thread:$0]  %s1, 3072, %s27, [#allocation6], 64, 64, 4
    $region9: #{mlp_forward.1} parent=1 // pred_fallthru
      _
    // Predicated region
    $region10: #{mlp_forward.1} parent=1 // pred_check
      _
    $region11: #{mlp_forward.1} parent=1 // pred_check_branch
      %34 = sbr.rel (0) target = $region13
    $region12: #{mlp_forward.1} parent=1 // pred_region
      _
    $region13: #{mlp_forward.1} parent=1 // pred_fallthru
      _
    // Predicated region
    $region14: #{mlp_forward.1} parent=1 // pred_check
      _
    $region15: #{mlp_forward.1} parent=1 // pred_check_branch
      %36 = sbr.rel (0) target = $region17
    $region16: #{mlp_forward.1} parent=1 // pred_region
      %37 = dma.done [#allocation3], 128
    $region17: #{mlp_forward.1} parent=1 // pred_fallthru
      _
    // Predicated region
    $region18: #{mlp_forward.1} parent=1 // pred_check
      _
    $region19: #{mlp_forward.1} parent=1 // pred_check_branch
      %39 = sbr.rel (0) target = $region21
    $region20: #{mlp_forward.1} parent=1 // pred_region
      %40 = dma.done [#allocation6], 3072
    $region21: #{mlp_forward.1} parent=1 // pred_fallthru
      _
    %v42 = vld [vmem:[#allocation2] sm:$0xff]
    %v43 = vpack.c.bf16 %v42, %v42
    %v44 = vld [vmem:[#allocation5] sm:$0xf]
    %v45 = vld [vmem:[#allocation5 + $0x4] sm:$0xf]
    %v46 = vld [vmem:[#allocation5 + $0x8] sm:$0xf]
    %v47 = vld [vmem:[#allocation5 + $0xc] sm:$0xf]
    %v48 = vld [vmem:[#allocation5 + $0x10] sm:$0xf]
    %v49 = vld [vmem:[#allocation5 + $0x14] sm:$0xf]
    %v50 = vld [vmem:[#allocation5 + $0x18] sm:$0xf]
    %v51 = vld [vmem:[#allocation5 + $0x1c] sm:$0xf]
    %v52 = vld [vmem:[#allocation5 + $0x20] sm:$0xf]
    %v53 = vld [vmem:[#allocation5 + $0x24] sm:$0xf]
    %v54 = vld [vmem:[#allocation5 + $0x28] sm:$0xf]
    %v55 = vld [vmem:[#allocation5 + $0x2c] sm:$0xf]
    %v56 = vld [vmem:[#allocation5 + $0x30] sm:$0xf]
    %v57 = vld [vmem:[#allocation5 + $0x34] sm:$0xf]
    %v58 = vld [vmem:[#allocation5 + $0x38] sm:$0xf]
    %v59 = vld [vmem:[#allocation5 + $0x3c] sm:$0xf]
    %v60 = vld [vmem:[%s2] sm:$0x1]
    %v61 = vlaneseq
    %v62 = vshrl.u32 %v61, 7
    %v63 = vsub.s32 0, %v62
    %v64 = vrot.slane %v60, %v63
    %v81 = vunpack.c.l.b16 %v44
    %v82 = vunpack.c.l.b16 %v45
    %v83 = vunpack.c.l.b16 %v46
    %v84 = vunpack.c.l.b16 %v47
    %v85 = vunpack.c.l.b16 %v48
    %v86 = vunpack.c.l.b16 %v49
    %v87 = vunpack.c.l.b16 %v50
    %v88 = vunpack.c.l.b16 %v51
    %v89 = vunpack.c.l.b16 %v52
    %v90 = vunpack.c.l.b16 %v53
    %v91 = vunpack.c.l.b16 %v54
    %v92 = vunpack.c.l.b16 %v55
    %v93 = vunpack.c.l.b16 %v56
    %v94 = vunpack.c.l.b16 %v57
    %v95 = vunpack.c.l.b16 %v58
    %v96 = vunpack.c.l.b16 %v59
    %v97 = vpack.c.b16 %v82, %v81
    %v98 = vpack.c.b16 %v84, %v83
    %v99 = vpack.c.b16 %v86, %v85
    %v100 = vpack.c.b16 %v88, %v87
    %v101 = vpack.c.b16 %v90, %v89
    %v102 = vpack.c.b16 %v92, %v91
    %v103 = vpack.c.b16 %v94, %v93
    %v104 = vpack.c.b16 %v96, %v95
    %113 = vmatprep.subr.bf16.mxu0 0
    %114 = vmatpush1.bf16.msra.mxu0 %v97
    %115 = vmatprep.subr.bf16.mxu0 0
    %116 = vmatpush1.bf16.msra.mxu0 %v98
    %117 = vmatprep.subr.bf16.mxu0 0
    %118 = vmatpush1.bf16.msra.mxu0 %v99
    %119 = vmatprep.subr.bf16.mxu0 0
    %120 = vmatpush1.bf16.msra.mxu0 %v100
    %121 = vmatprep.subr.bf16.mxu0 0
    %122 = vmatpush1.bf16.msra.mxu0 %v101
    %123 = vmatprep.subr.bf16.mxu0 0
    %124 = vmatpush1.bf16.msra.mxu0 %v102
    %125 = vmatprep.subr.bf16.mxu0 0
    %126 = vmatpush1.bf16.msra.mxu0 %v103
    %127 = vmatprep.subr.bf16.mxu0 0
    %128 = vmatpush1.bf16.msra.mxu0 %v104
    %129 = vmatprep.subr.bf16.mxu0 0
    %130 = vmatpush1.bf16.msra.mxu0 0
    %131 = vmatprep.subr.bf16.mxu0 0
    %132 = vmatpush1.bf16.msra.mxu0 0
    %133 = vmatprep.subr.bf16.mxu0 0
    %134 = vmatpush1.bf16.msra.mxu0 0
    %135 = vmatprep.subr.bf16.mxu0 0
    %136 = vmatpush1.bf16.msra.mxu0 0
    %137 = vmatprep.subr.bf16.mxu0 0
    %138 = vmatpush1.bf16.msra.mxu0 0
    %139 = vmatprep.subr.bf16.mxu0 0
    %140 = vmatpush1.bf16.msra.mxu0 0
    %141 = vmatprep.subr.bf16.mxu0 0
    %142 = vmatpush1.bf16.msra.mxu0 0
    %143 = vmatprep.subr.bf16.mxu0 0
    %144 = vmatpush1.bf16.msra.mxu0 0
    %145 = vmatprep.mubr.bf16.mxu0 0
    %146 = vmatmul.mubr.bf16.gmra.mrb[0].mxu0 %v43
    %v147 = vpop.f32.mrb[0].mxu0
    %v148 = vadd.f32 %v64, %v147
    %v149 = vpop.f32.mrb[0].mxu0
    %v150 = vpop.f32.mrb[0].mxu0
    %v151 = vpop.f32.mrb[0].mxu0
    %152 = vdwg.mxu0
    %v153 = vmax.f32 %v148, 0.0
    %v154 = vpack.c.bf16 %v153, %v153
    %s155 = scalar_lea.vmem [#allocation5], 64
    %v156 = vld [vmem:[%s155] sm:$0xf]
    %v157 = vld [vmem:[%s155 + $0x4] sm:$0xf]
    %v158 = vld [vmem:[%s155 + $0x8] sm:$0xf]
    %v159 = vld [vmem:[%s155 + $0xc] sm:$0xf]
    %v160 = vld [vmem:[%s155 + $0x10] sm:$0xf]
    %v161 = vld [vmem:[%s155 + $0x14] sm:$0xf]
    %v162 = vld [vmem:[%s155 + $0x18] sm:$0xf]
    %v163 = vld [vmem:[%s155 + $0x1c] sm:$0xf]
    %v164 = vld [vmem:[%s155 + $0x20] sm:$0xf]
    %v165 = vld [vmem:[%s155 + $0x24] sm:$0xf]
    %v166 = vld [vmem:[%s155 + $0x28] sm:$0xf]
    %v167 = vld [vmem:[%s155 + $0x2c] sm:$0xf]
    %v168 = vld [vmem:[%s155 + $0x30] sm:$0xf]
    %v169 = vld [vmem:[%s155 + $0x34] sm:$0xf]
    %v170 = vld [vmem:[%s155 + $0x38] sm:$0xf]
    %v171 = vld [vmem:[%s155 + $0x3c] sm:$0xf]
    %v172 = vld [vmem:[%s2 + $0x1] sm:$0x1]
    %v173 = vlaneseq
    %v174 = vshrl.u32 %v173, 7
    %v175 = vsub.s32 0, %v174
    %v176 = vrot.slane %v172, %v175
    %v193 = vunpack.c.l.b16 %v156
    %v194 = vunpack.c.l.b16 %v157
    %v195 = vunpack.c.l.b16 %v158
    %v196 = vunpack.c.l.b16 %v159
    %v197 = vunpack.c.l.b16 %v160
    %v198 = vunpack.c.l.b16 %v161
    %v199 = vunpack.c.l.b16 %v162
    %v200 = vunpack.c.l.b16 %v163
    %v201 = vunpack.c.l.b16 %v164
    %v202 = vunpack.c.l.b16 %v165
    %v203 = vunpack.c.l.b16 %v166
    %v204 = vunpack.c.l.b16 %v167
    %v205 = vunpack.c.l.b16 %v168
    %v206 = vunpack.c.l.b16 %v169
    %v207 = vunpack.c.l.b16 %v170
    %v208 = vunpack.c.l.b16 %v171
    %v209 = vpack.c.b16 %v194, %v193
    %v210 = vpack.c.b16 %v196, %v195
    %v211 = vpack.c.b16 %v198, %v197
    %v212 = vpack.c.b16 %v200, %v199
    %v213 = vpack.c.b16 %v202, %v201
    %v214 = vpack.c.b16 %v204, %v203
    %v215 = vpack.c.b16 %v206, %v205
    %v216 = vpack.c.b16 %v208, %v207
    %225 = vmatprep.subr.bf16.mxu0 0
    %226 = vmatpush1.bf16.msra.mxu0 %v209
    %227 = vmatprep.subr.bf16.mxu0 0
    %228 = vmatpush1.bf16.msra.mxu0 %v210
    %229 = vmatprep.subr.bf16.mxu0 0
    %230 = vmatpush1.bf16.msra.mxu0 %v211
    %231 = vmatprep.subr.bf16.mxu0 0
    %232 = vmatpush1.bf16.msra.mxu0 %v212
    %233 = vmatprep.subr.bf16.mxu0 0
    %234 = vmatpush1.bf16.msra.mxu0 %v213
    %235 = vmatprep.subr.bf16.mxu0 0
    %236 = vmatpush1.bf16.msra.mxu0 %v214
    %237 = vmatprep.subr.bf16.mxu0 0
    %238 = vmatpush1.bf16.msra.mxu0 %v215
    %239 = vmatprep.subr.bf16.mxu0 0
    %240 = vmatpush1.bf16.msra.mxu0 %v216
    %241 = vmatprep.subr.bf16.mxu0 0
    %242 = vmatpush1.bf16.msra.mxu0 0
    %243 = vmatprep.subr.bf16.mxu0 0
    %244 = vmatpush1.bf16.msra.mxu0 0
    %245 = vmatprep.subr.bf16.mxu0 0
    %246 = vmatpush1.bf16.msra.mxu0 0
    %247 = vmatprep.subr.bf16.mxu0 0
    %248 = vmatpush1.bf16.msra.mxu0 0
    %249 = vmatprep.subr.bf16.mxu0 0
    %250 = vmatpush1.bf16.msra.mxu0 0
    %251 = vmatprep.subr.bf16.mxu0 0
    %252 = vmatpush1.bf16.msra.mxu0 0
    %253 = vmatprep.subr.bf16.mxu0 0
    %254 = vmatpush1.bf16.msra.mxu0 0
    %255 = vmatprep.subr.bf16.mxu0 0
    %256 = vmatpush1.bf16.msra.mxu0 0
    %257 = vmatprep.mubr.bf16.mxu0 0
    %258 = vmatmul.mubr.bf16.gmra.mrb[0].mxu0 %v154
    %v259 = vpop.f32.mrb[0].mxu0
    %v260 = vadd.f32 %v176, %v259
    %v261 = vpop.f32.mrb[0].mxu0
    %v262 = vpop.f32.mrb[0].mxu0
    %v263 = vpop.f32.mrb[0].mxu0
    %264 = vdwg.mxu0
    %v265 = vmax.f32 %v260, 0.0
    %v266 = vpack.c.bf16 %v265, %v265
    %s267 = scalar_lea.vmem [#allocation5], 128
    %v268 = vld [vmem:[%s267] sm:$0xf]
    %v269 = vld [vmem:[%s267 + $0x4] sm:$0xf]
    %v270 = vld [vmem:[%s267 + $0x8] sm:$0xf]
    %v271 = vld [vmem:[%s267 + $0xc] sm:$0xf]
    %v272 = vld [vmem:[%s267 + $0x10] sm:$0xf]
    %v273 = vld [vmem:[%s267 + $0x14] sm:$0xf]
    %v274 = vld [vmem:[%s267 + $0x18] sm:$0xf]
    %v275 = vld [vmem:[%s267 + $0x1c] sm:$0xf]
    %v276 = vld [vmem:[%s267 + $0x20] sm:$0xf]
    %v277 = vld [vmem:[%s267 + $0x24] sm:$0xf]
    %v278 = vld [vmem:[%s267 + $0x28] sm:$0xf]
    %v279 = vld [vmem:[%s267 + $0x2c] sm:$0xf]
    %v280 = vld [vmem:[%s267 + $0x30] sm:$0xf]
    %v281 = vld [vmem:[%s267 + $0x34] sm:$0xf]
    %v282 = vld [vmem:[%s267 + $0x38] sm:$0xf]
    %v283 = vld [vmem:[%s267 + $0x3c] sm:$0xf]
    %v284 = vld [vmem:[%s2 + $0x2] sm:$0x1]
    %v285 = vlaneseq
    %v286 = vshrl.u32 %v285, 7
    %v287 = vsub.s32 0, %v286
    %v288 = vrot.slane %v284, %v287
    %v305 = vunpack.c.l.b16 %v268
    %v306 = vunpack.c.l.b16 %v269
    %v307 = vunpack.c.l.b16 %v270
    %v308 = vunpack.c.l.b16 %v271
    %v309 = vunpack.c.l.b16 %v272
    %v310 = vunpack.c.l.b16 %v273
    %v311 = vunpack.c.l.b16 %v274
    %v312 = vunpack.c.l.b16 %v275
    %v313 = vunpack.c.l.b16 %v276
    %v314 = vunpack.c.l.b16 %v277
    %v315 = vunpack.c.l.b16 %v278
    %v316 = vunpack.c.l.b16 %v279
    %v317 = vunpack.c.l.b16 %v280
    %v318 = vunpack.c.l.b16 %v281
    %v319 = vunpack.c.l.b16 %v282
    %v320 = vunpack.c.l.b16 %v283
    %v321 = vpack.c.b16 %v306, %v305
    %v322 = vpack.c.b16 %v308, %v307
    %v323 = vpack.c.b16 %v310, %v309
    %v324 = vpack.c.b16 %v312, %v311
    %v325 = vpack.c.b16 %v314, %v313
    %v326 = vpack.c.b16 %v316, %v315
    %v327 = vpack.c.b16 %v318, %v317
    %v328 = vpack.c.b16 %v320, %v319
    %337 = vmatprep.subr.bf16.mxu0 0
    %338 = vmatpush1.bf16.msra.mxu0 %v321
    %339 = vmatprep.subr.bf16.mxu0 0
    %340 = vmatpush1.bf16.msra.mxu0 %v322
    %341 = vmatprep.subr.bf16.mxu0 0
    %342 = vmatpush1.bf16.msra.mxu0 %v323
    %343 = vmatprep.subr.bf16.mxu0 0
    %344 = vmatpush1.bf16.msra.mxu0 %v324
    %345 = vmatprep.subr.bf16.mxu0 0
    %346 = vmatpush1.bf16.msra.mxu0 %v325
    %347 = vmatprep.subr.bf16.mxu0 0
    %348 = vmatpush1.bf16.msra.mxu0 %v326
    %349 = vmatprep.subr.bf16.mxu0 0
    %350 = vmatpush1.bf16.msra.mxu0 %v327
    %351 = vmatprep.subr.bf16.mxu0 0
    %352 = vmatpush1.bf16.msra.mxu0 %v328
    %353 = vmatprep.subr.bf16.mxu0 0
    %354 = vmatpush1.bf16.msra.mxu0 0
    %355 = vmatprep.subr.bf16.mxu0 0
    %356 = vmatpush1.bf16.msra.mxu0 0
    %357 = vmatprep.subr.bf16.mxu0 0
    %358 = vmatpush1.bf16.msra.mxu0 0
    %359 = vmatprep.subr.bf16.mxu0 0
    %360 = vmatpush1.bf16.msra.mxu0 0
    %361 = vmatprep.subr.bf16.mxu0 0
    %362 = vmatpush1.bf16.msra.mxu0 0
    %363 = vmatprep.subr.bf16.mxu0 0
    %364 = vmatpush1.bf16.msra.mxu0 0
    %365 = vmatprep.subr.bf16.mxu0 0
    %366 = vmatpush1.bf16.msra.mxu0 0
    %367 = vmatprep.subr.bf16.mxu0 0
    %368 = vmatpush1.bf16.msra.mxu0 0
    %369 = vmatprep.mubr.bf16.mxu0 0
    %370 = vmatmul.mubr.bf16.gmra.mrb[0].mxu0 %v266
    %v371 = vpop.f32.mrb[0].mxu0
    %v372 = vadd.f32 %v288, %v371
    %v373 = vpop.f32.mrb[0].mxu0
    %v374 = vpop.f32.mrb[0].mxu0
    %v375 = vpop.f32.mrb[0].mxu0
    %376 = vdwg.mxu0
    %377 = vst [vmem:[#allocation7] sm:$0xff] %v372
    // Predicated region
    $region22: #{mlp_forward.1} parent=1 // pred_check
      _
    $region23: #{mlp_forward.1} parent=1 // pred_check_branch
      %379 = sbr.rel (0) target = $region25
    $region24: #{mlp_forward.1} parent=1 // pred_region
      %s381 = ssub.s32 128, 128
      %382 = vsyncadd [#allocation4], %s381
      %s384 = sshll.u32 [#allocation7], 4
      %s385 = int_to_ptr.vmem [resolvable:$true] %s384
      %387 = dma.vmem_to_hbm [thread:$0]  %s385, 128, %s3, [#allocation4]
    $region25: #{mlp_forward.1} parent=1 // pred_fallthru
      _
    // Predicated region
    $region26: #{mlp_forward.1} parent=1 // pred_check
      _
    $region27: #{mlp_forward.1} parent=1 // pred_check_branch
      %389 = sbr.rel (0) target = $region29
    $region28: #{mlp_forward.1} parent=1 // pred_region
      %390 = dma.done [#allocation4], 128
    $region29: #{mlp_forward.1} parent=1 // pred_fallthru
      _
    %391 = vsyncpa [#allocation3], 1
    %392 = vsyncpa [#allocation6], 1
    %393 = vsyncpa [#allocation4], 1

</llo_original>
